<compile_context>
chip_gen: v7x
topology: tpu7x:2x2x1
jax: 0.10.0
libtpu: 0.0.40
codegen_flags: <defaults>
</compile_context>

<pallas_src>
import numpy as np
import jax
import jax.numpy as jnp
from jax.experimental import pallas as pl
from jax.experimental.pallas import tpu as pltpu

N_QUBITS = 4
N_STATES = 2 ** N_QUBITS     # 16
N_LAYERS = 6                 # weights shape (6, 4, 3)

# bits[w, s] = value of wire w in basis state s (wire 0 = most significant bit).
# Host-side constant only (the kernel derives bits from an in-kernel iota).
_BITS = np.array(
    [[(s >> (N_QUBITS - 1 - w)) & 1 for s in range(N_STATES)] for w in range(N_QUBITS)],
    dtype=bool,
)                                                               # (4, 16)


# ----------------------------------------------------------------------------
# Plain-numpy construction of the (input-independent) StronglyEntanglingLayers
# unitary and of the fused constant matrices used by the kernel.
# ----------------------------------------------------------------------------
def _rz(a):
    return np.array([[np.exp(-0.5j * a), 0.0], [0.0, np.exp(0.5j * a)]], dtype=complex)


def _ry(t):
    c, s = np.cos(t / 2.0), np.sin(t / 2.0)
    return np.array([[c, -s], [s, c]], dtype=complex)


def _rot(phi, theta, omega):
    # qml.Rot(phi, theta, omega) = RZ(omega) @ RY(theta) @ RZ(phi)
    return _rz(omega) @ _ry(theta) @ _rz(phi)


_X = np.array([[0.0, 1.0], [1.0, 0.0]], dtype=complex)
_P0 = np.array([[1.0, 0.0], [0.0, 0.0]], dtype=complex)
_P1 = np.array([[0.0, 0.0], [0.0, 1.0]], dtype=complex)
_I2 = np.eye(2, dtype=complex)


def _embed(ops):
    """Kron product over wires 0..N-1 (wire 0 = most significant bit)."""
    m = np.array([[1.0 + 0.0j]])
    for w in range(N_QUBITS):
        m = np.kron(m, ops.get(w, _I2))
    return m


def _cnot(c, t):
    return _embed({c: _P0}) + _embed({c: _P1, t: _X})


def strongly_entangling_unitary(weights):
    """Full 16x16 unitary of qml.StronglyEntanglingLayers(weights, wires=range(4))."""
    u = np.eye(N_STATES, dtype=complex)
    for layer in range(weights.shape[0]):
        for w in range(N_QUBITS):
            g = _rot(weights[layer, w, 0], weights[layer, w, 1], weights[layer, w, 2])
            u = _embed({w: g}) @ u
        r = (layer % (N_QUBITS - 1)) + 1          # PennyLane default ranges
        for w in range(N_QUBITS):
            u = _cnot(w, (w + r) % N_QUBITS) @ u
    return u


def build_constants(weights):
    """Fold unitary + embedding phase + PauliZ signs into W_t (32,16) and Z_t (4,32)."""
    u = strongly_entangling_unitary(weights)                      # (16, 16) complex
    popcount = _BITS.astype(np.int64).sum(axis=0)                 # (16,)
    phase = (-1j) ** popcount                                     # RX product-state phase
    v = phase[:, None] * u.T                                      # psi_row = mag_row @ V
    w_mat = np.hstack([np.real(v), np.imag(v)]).astype(np.float32)   # (16, 32)
    zsign = (1.0 - 2.0 * _BITS.astype(np.float32)).T                 # (16, 4)
    zbig = np.vstack([zsign, zsign]).astype(np.float32)              # (32, 4)
    w_t = np.ascontiguousarray(w_mat.T)            # (32, 16): z_t   = W^T @ mag_t
    z_t = np.ascontiguousarray(zbig.T)             # (4, 32):  out_t = Z^T @ (z*z)
    return jnp.asarray(w_t), jnp.asarray(z_t)


# ----------------------------------------------------------------------------
# Pallas kernel (feature-major): magnitudes -> fused matmul -> square -> Z contraction
# ----------------------------------------------------------------------------
def _quantum_kernel(x_ref, wt_ref, zt_ref, out_ref):
    x = x_ref[...]                           # (4, TB) angles, feature-major
    c = jnp.cos(0.5 * x)                     # (4, TB)
    s = jnp.sin(0.5 * x)                     # (4, TB)

    # |psi0|[st, b] = prod_w ( sin(x_w/2) if bit_w(st) else cos(x_w/2) )
    # Bit masks come from an in-kernel iota (no captured constant arrays).
    state = jax.lax.broadcasted_iota(jnp.int32, (N_STATES, 1), 0)       # (16, 1)
    mag = None
    for w in range(N_QUBITS):
        on = jnp.bitwise_and(state, 1 << (N_QUBITS - 1 - w)) > 0        # (16, 1) bool
        f = jnp.where(on, s[w:w + 1, :], c[w:w + 1, :])                 # (16, TB)
        mag = f if mag is None else mag * f

    # z = [Re(psi); Im(psi)]   (embedding phase already folded into W_t offline)
    z = jnp.dot(wt_ref[...], mag, preferred_element_type=jnp.float32)   # (32, TB)
    # <Z_w> = sum_s |psi_s|^2 * (-1)^{bit_w(s)}  ==  Z_t @ (z*z)
    out_ref[...] = jnp.dot(zt_ref[...], z * z,
                           preferred_element_type=jnp.float32)          # (4, TB)


def _forward_jnp(x, w_t, z_t):
    """Small-batch fast path: identical math, plain XLA (no pallas_call overhead)."""
    c = jnp.cos(0.5 * x)                     # (B, 4)
    s = jnp.sin(0.5 * x)
    bits = jnp.asarray(_BITS)                # (4, 16)  -- fine outside Pallas
    mag = jnp.where(bits[0][None, :], s[:, 0:1], c[:, 0:1])
    for w in range(1, N_QUBITS):
        mag = mag * jnp.where(bits[w][None, :], s[:, w:w + 1], c[:, w:w + 1])
    z = mag @ w_t.T                          # (B, 32)
    return (z * z) @ z_t.T                   # (B, 4)


def _round_up(a, b):
    return ((a + b - 1) // b) * b


def _choose_tiling(b, max_block_b):
    """Pick a lane-tile (multiple of 128) and padded batch size.

    >= 2 grid steps whenever B > 128 so the "parallel" axis can be sharded across
    v7x's two TensorCores; padding waste stays below 128 lanes per tile.
    """
    lanes = _round_up(max(b, 1), 128)
    if lanes <= 128:
        return 128, 128
    num_tiles = max(2, -(-lanes // max_block_b))
    block = min(max_block_b, _round_up(-(-lanes // num_tiles), 128))
    padded = _round_up(lanes, block)
    return block, padded


def quantum_layer_forward(x, w_t, z_t, *, max_block_b=4096, min_pallas_batch=512):
    """Forward pass: x (B, 4) f32 angles -> (B, 4) f32 PauliZ expectation values."""
    b = x.shape[0]
    if b < min_pallas_batch:
        return _forward_jnp(x.astype(jnp.float32), w_t, z_t)

    block_b, padded_b = _choose_tiling(b, max_block_b)
    x_t = x.astype(jnp.float32).T                                 # (4, B) feature-major
    if padded_b != b:
        x_t = jnp.pad(x_t, ((0, 0), (0, padded_b - b)))

    flops_per_col = (3 * N_STATES                        # mag products
                     + 2 * (2 * N_STATES) * N_STATES     # W_t @ mag
                     + 2 * N_STATES                      # z*z
                     + 2 * N_QUBITS * (2 * N_STATES))    # Z_t @ (z*z)
    cost = pl.CostEstimate(
        flops=flops_per_col * padded_b,
        transcendentals=2 * N_QUBITS * padded_b,
        bytes_accessed=4 * (2 * N_QUBITS * padded_b
                            + 2 * N_STATES * N_STATES + N_QUBITS * 2 * N_STATES),
    )

    grid_spec = pltpu.PrefetchScalarGridSpec(
        num_scalar_prefetch=0,
        grid=(padded_b // block_b,),
        in_specs=[
            pl.BlockSpec((N_QUBITS, block_b), lambda i: (0, i)),          # x tile (4, TB)
            pl.BlockSpec((2 * N_STATES, N_STATES), lambda i: (0, 0)),     # W_t (32, 16)
            pl.BlockSpec((N_QUBITS, 2 * N_STATES), lambda i: (0, 0)),     # Z_t (4, 32)
        ],
        out_specs=pl.BlockSpec((N_QUBITS, block_b), lambda i: (0, i)),    # out (4, TB)
    )
    out_t = pl.pallas_call(
        _quantum_kernel,
        out_shape=jax.ShapeDtypeStruct((N_QUBITS, padded_b), jnp.float32),
        grid_spec=grid_spec,
        compiler_params=pltpu.CompilerParams(dimension_semantics=("parallel",)),
        cost_estimate=cost,
    )(x_t, w_t, z_t)
    return out_t[:, :b].T                                          # (B, 4)


# ----------------------------------------------------------------------------
# Pure numpy reference (full statevector math) for a correctness check.
# ----------------------------------------------------------------------------
def _numpy_reference(x_np, u):
    b_sz = x_np.shape[0]
    psi0 = np.zeros((b_sz, N_STATES), dtype=complex)
    for b in range(b_sz):
        amp = np.array([1.0 + 0.0j])
        for w in range(N_QUBITS):
            a = x_np[b, w]
            amp = np.kron(amp, np.array([np.cos(a / 2.0), -1j * np.sin(a / 2.0)]))
        psi0[b] = amp
    psi = psi0 @ u.T
    probs = np.abs(psi) ** 2
    zsign = (1.0 - 2.0 * _BITS.astype(np.float64)).T
    return probs @ zsign


if __name__ == "__main__":
    key = jax.random.PRNGKey(0)
    kx, kw = jax.random.split(key)

    batch = 8
    x = jax.random.uniform(kx, (batch, N_QUBITS), dtype=jnp.float32,
                           minval=-np.pi, maxval=np.pi)

    # Deterministic synthetic weights for StronglyEntanglingLayers: (6, 4, 3) in [0, 2*pi)
    weights = np.asarray(
        jax.random.uniform(kw, (N_LAYERS, N_QUBITS, 3), dtype=jnp.float32,
                           minval=0.0, maxval=2.0 * np.pi),
        dtype=np.float64)

    w_t, z_t = build_constants(weights)

    # min_pallas_batch=0 -> always exercise the Pallas kernel here.
    out = quantum_layer_forward(x, w_t, z_t, min_pallas_batch=0)
    out = jax.block_until_ready(out)

    u_sel = strongly_entangling_unitary(weights)
    ref = _numpy_reference(np.asarray(x, dtype=np.float64), u_sel)
    assert out.shape == (batch, N_QUBITS)
    np.testing.assert_allclose(np.asarray(out), ref, atol=5e-5, rtol=5e-5)

    print("KERNEL_OK")
</pallas_src>

<mosaic_0001>
module attributes {stable_mosaic.version = 11 : i64} {
  func.func @_quantum_kernel(%arg0: i32, %arg1: memref<4x128xf32, #tpu.memory_space<vmem>>, %arg2: memref<32x16xf32, #tpu.memory_space<vmem>>, %arg3: memref<4x32xf32, #tpu.memory_space<vmem>>, %arg4: memref<4x128xf32, #tpu.memory_space<vmem>>) attributes {dimension_semantics = [#tpu.dimension_semantics<parallel>], iteration_bounds = array<i64: 1>, scalar_prefetch = 0 : i64, scratch_operands = 0 : i64, tpu.core_type = #tpu.core_type<tc>, window_params = [{transform_indices = @transform_0, window_bounds = array<i64: 4, 128>}, {pipeline_mode = #tpu.pipeline_mode<synchronous>, transform_indices = @transform_1, window_bounds = array<i64: 32, 16>}, {pipeline_mode = #tpu.pipeline_mode<synchronous>, transform_indices = @transform_2, window_bounds = array<i64: 4, 32>}, {transform_indices = @transform_3, window_bounds = array<i64: 4, 128>}]} {
    %c0 = arith.constant 0 : index
    %c0_0 = arith.constant 0 : index
    %0 = vector.load %arg1[%c0, %c0_0] : memref<4x128xf32, #tpu.memory_space<vmem>>, vector<4x128xf32>
    %cst = arith.constant 5.000000e-01 : f32
    %1 = vector.broadcast %cst : f32 to vector<4x128xf32>
    %2 = arith.mulf %1, %0 : vector<4x128xf32>
    %3 = math.cos %2 : vector<4x128xf32>
    %cst_1 = arith.constant 5.000000e-01 : f32
    %4 = vector.broadcast %cst_1 : f32 to vector<4x128xf32>
    %5 = arith.mulf %4, %0 : vector<4x128xf32>
    %6 = math.sin %5 : vector<4x128xf32>
    %7 = tpu.iota {dimensions = array<i32: 0>} : vector<16x1xi32>
    %c8_i32 = arith.constant 8 : i32
    %8 = vector.broadcast %c8_i32 : i32 to vector<16x1xi32>
    %9 = arith.andi %7, %8 : vector<16x1xi32>
    %c0_i32 = arith.constant 0 : i32
    %10 = vector.broadcast %c0_i32 : i32 to vector<16x1xi32>
    %11 = arith.cmpi sgt, %9, %10 : vector<16x1xi32>
    %12 = vector.extract_strided_slice %6 {offsets = [0, 0], sizes = [1, 128], strides = [1, 1]} : vector<4x128xf32> to vector<1x128xf32>
    %13 = vector.extract_strided_slice %3 {offsets = [0, 0], sizes = [1, 128], strides = [1, 1]} : vector<4x128xf32> to vector<1x128xf32>
    %14 = vector.shape_cast %11 : vector<16x1xi1> to vector<16x1xi1>
    %15 = vector.broadcast %14 : vector<16x1xi1> to vector<16x128xi1>
    %16 = vector.shape_cast %12 : vector<1x128xf32> to vector<1x128xf32>
    %17 = vector.broadcast %16 : vector<1x128xf32> to vector<16x128xf32>
    %18 = vector.shape_cast %13 : vector<1x128xf32> to vector<1x128xf32>
    %19 = vector.broadcast %18 : vector<1x128xf32> to vector<16x128xf32>
    %20 = arith.select %15, %17, %19 : vector<16x128xi1>, vector<16x128xf32>
    %c4_i32 = arith.constant 4 : i32
    %21 = vector.broadcast %c4_i32 : i32 to vector<16x1xi32>
    %22 = arith.andi %7, %21 : vector<16x1xi32>
    %c0_i32_2 = arith.constant 0 : i32
    %23 = vector.broadcast %c0_i32_2 : i32 to vector<16x1xi32>
    %24 = arith.cmpi sgt, %22, %23 : vector<16x1xi32>
    %25 = vector.extract_strided_slice %6 {offsets = [1, 0], sizes = [1, 128], strides = [1, 1]} : vector<4x128xf32> to vector<1x128xf32>
    %26 = vector.extract_strided_slice %3 {offsets = [1, 0], sizes = [1, 128], strides = [1, 1]} : vector<4x128xf32> to vector<1x128xf32>
    %27 = vector.shape_cast %24 : vector<16x1xi1> to vector<16x1xi1>
    %28 = vector.broadcast %27 : vector<16x1xi1> to vector<16x128xi1>
    %29 = vector.shape_cast %25 : vector<1x128xf32> to vector<1x128xf32>
    %30 = vector.broadcast %29 : vector<1x128xf32> to vector<16x128xf32>
    %31 = vector.shape_cast %26 : vector<1x128xf32> to vector<1x128xf32>
    %32 = vector.broadcast %31 : vector<1x128xf32> to vector<16x128xf32>
    %33 = arith.select %28, %30, %32 : vector<16x128xi1>, vector<16x128xf32>
    %34 = arith.mulf %20, %33 : vector<16x128xf32>
    %c2_i32 = arith.constant 2 : i32
    %35 = vector.broadcast %c2_i32 : i32 to vector<16x1xi32>
    %36 = arith.andi %7, %35 : vector<16x1xi32>
    %c0_i32_3 = arith.constant 0 : i32
    %37 = vector.broadcast %c0_i32_3 : i32 to vector<16x1xi32>
    %38 = arith.cmpi sgt, %36, %37 : vector<16x1xi32>
    %39 = vector.extract_strided_slice %6 {offsets = [2, 0], sizes = [1, 128], strides = [1, 1]} : vector<4x128xf32> to vector<1x128xf32>
    %40 = vector.extract_strided_slice %3 {offsets = [2, 0], sizes = [1, 128], strides = [1, 1]} : vector<4x128xf32> to vector<1x128xf32>
    %41 = vector.shape_cast %38 : vector<16x1xi1> to vector<16x1xi1>
    %42 = vector.broadcast %41 : vector<16x1xi1> to vector<16x128xi1>
    %43 = vector.shape_cast %39 : vector<1x128xf32> to vector<1x128xf32>
    %44 = vector.broadcast %43 : vector<1x128xf32> to vector<16x128xf32>
    %45 = vector.shape_cast %40 : vector<1x128xf32> to vector<1x128xf32>
    %46 = vector.broadcast %45 : vector<1x128xf32> to vector<16x128xf32>
    %47 = arith.select %42, %44, %46 : vector<16x128xi1>, vector<16x128xf32>
    %48 = arith.mulf %34, %47 : vector<16x128xf32>
    %c1_i32 = arith.constant 1 : i32
    %49 = vector.broadcast %c1_i32 : i32 to vector<16x1xi32>
    %50 = arith.andi %7, %49 : vector<16x1xi32>
    %c0_i32_4 = arith.constant 0 : i32
    %51 = vector.broadcast %c0_i32_4 : i32 to vector<16x1xi32>
    %52 = arith.cmpi sgt, %50, %51 : vector<16x1xi32>
    %53 = vector.extract_strided_slice %6 {offsets = [3, 0], sizes = [1, 128], strides = [1, 1]} : vector<4x128xf32> to vector<1x128xf32>
    %54 = vector.extract_strided_slice %3 {offsets = [3, 0], sizes = [1, 128], strides = [1, 1]} : vector<4x128xf32> to vector<1x128xf32>
    %55 = vector.shape_cast %52 : vector<16x1xi1> to vector<16x1xi1>
    %56 = vector.broadcast %55 : vector<16x1xi1> to vector<16x128xi1>
    %57 = vector.shape_cast %53 : vector<1x128xf32> to vector<1x128xf32>
    %58 = vector.broadcast %57 : vector<1x128xf32> to vector<16x128xf32>
    %59 = vector.shape_cast %54 : vector<1x128xf32> to vector<1x128xf32>
    %60 = vector.broadcast %59 : vector<1x128xf32> to vector<16x128xf32>
    %61 = arith.select %56, %58, %60 : vector<16x128xi1>, vector<16x128xf32>
    %62 = arith.mulf %48, %61 : vector<16x128xf32>
    %c0_5 = arith.constant 0 : index
    %c0_6 = arith.constant 0 : index
    %63 = vector.load %arg2[%c0_5, %c0_6] : memref<32x16xf32, #tpu.memory_space<vmem>>, vector<32x16xf32>
    %cst_7 = arith.constant dense<0.000000e+00> : vector<32x128xf32>
    %64 = tpu.matmul %63, %62, %cst_7 {dimension_numbers = #tpu.dot_dimension_numbers<[1], [0], [0], [1], [0, 0, 1, 1], [], []>} : vector<32x16xf32>, vector<16x128xf32>, vector<32x128xf32> -> vector<32x128xf32>
    %c0_8 = arith.constant 0 : index
    %c0_9 = arith.constant 0 : index
    %65 = vector.load %arg3[%c0_8, %c0_9] : memref<4x32xf32, #tpu.memory_space<vmem>>, vector<4x32xf32>
    %66 = arith.mulf %64, %64 : vector<32x128xf32>
    %cst_10 = arith.constant dense<0.000000e+00> : vector<4x128xf32>
    %67 = tpu.matmul %65, %66, %cst_10 {dimension_numbers = #tpu.dot_dimension_numbers<[1], [0], [0], [1], [0, 0, 1, 1], [], []>} : vector<4x32xf32>, vector<32x128xf32>, vector<4x128xf32> -> vector<4x128xf32>
    %c0_11 = arith.constant 0 : index
    %c0_12 = arith.constant 0 : index
    %68 = vector.load %arg4[%c0_11, %c0_12] : memref<4x128xf32, #tpu.memory_space<vmem>>, vector<4x128xf32>
    tpu.vector_store %arg4[%c0_11, %c0_12], %67 {strides = array<i32>} : memref<4x128xf32, #tpu.memory_space<vmem>>, vector<4x128xf32>,
    return
  }
  func.func @transform_0(%arg0: i32) -> (i32, i32) {
    %c0_i32 = arith.constant 0 : i32
    %c0_i32_0 = arith.constant 0 : i32
    return %c0_i32, %arg0 : i32, i32
  }
  func.func @transform_1(%arg0: i32) -> (i32, i32) {
    %c0_i32 = arith.constant 0 : i32
    %c0_i32_0 = arith.constant 0 : i32
    %c0_i32_1 = arith.constant 0 : i32
    return %c0_i32, %c0_i32_0 : i32, i32
  }
  func.func @transform_2(%arg0: i32) -> (i32, i32) {
    %c0_i32 = arith.constant 0 : i32
    %c0_i32_0 = arith.constant 0 : i32
    %c0_i32_1 = arith.constant 0 : i32
    return %c0_i32, %c0_i32_0 : i32, i32
  }
  func.func @transform_3(%arg0: i32) -> (i32, i32) {
    %c0_i32 = arith.constant 0 : i32
    %c0_i32_0 = arith.constant 0 : i32
    return %c0_i32, %arg0 : i32, i32
  }
}

</mosaic_0001>

<llo_original>
// kernel: tpu_custom_call.1
$region0: #{tpu_custom_call.1}
  #allocation0 [shape = 'u32[]', space=smem, size = 0x4, offset = 0x4, fixed_abs, tag = 'smem constant byte address 0x4 - core index']
  #allocation1 [shape = 'u32[144,128]{1,0:T(1,128)}', space=vmem, size = 0x12000, scoped, tag = 'internal scratch']
  %s0 = inlined_call_operand.vmem [shape: f32[4,128], index: 0, kind: input, shape index: {}]
  %s1 = inlined_call_operand.vmem [shape: f32[32,16], index: 1, kind: input, shape index: {}]
  %s2 = inlined_call_operand.vmem [shape: f32[4,32], index: 2, kind: input, shape index: {}]
  %s3 = inlined_call_operand.hbm [shape: f32[4,128], index: 3, kind: output, shape index: {}]
  %s4 = sld [smem:[#allocation0]]
  $region22: #{tpu_custom_call.1} parent=0
    _
  %s6 = ssub.s32 1, %s4
  %s7 = scalar_select 0, %s6, %s4
  $region1: #{tpu_custom_call.1} parent=0
    #allocation2 [shape = 'u8[2048]{0}', space=vmem, size = 0x800, scoped, tag = 'output window, operand 0, single buffered']
    #allocation3 [shape = 's32[1]{0}', space=sflag, size = 0x4, scoped, tag = 'scoped memory for tpu_custom_call.1']
    %8 = vsyncpa [#allocation3], 0
    // Predicated region
    $region2: #{tpu_custom_call.1} parent=1 // pred_check
      _
    $region3: #{tpu_custom_call.1} parent=1 // pred_check_branch
      %10 = sbr.rel (0) target = $region5
    $region4: #{tpu_custom_call.1} parent=1 // pred_region
      _
    $region5: #{tpu_custom_call.1} parent=1 // pred_fallthru
      _
    // Predicated region
    $region6: #{tpu_custom_call.1} parent=1 // pred_check
      _
    $region7: #{tpu_custom_call.1} parent=1 // pred_check_branch
      %12 = sbr.rel (0) target = $region9
    $region8: #{tpu_custom_call.1} parent=1 // pred_region
      _
    $region9: #{tpu_custom_call.1} parent=1 // pred_fallthru
      _
    // Predicated region
    $region10: #{tpu_custom_call.1} parent=1 // pred_check
      _
    $region11: #{tpu_custom_call.1} parent=1 // pred_check_branch
      %14 = sbr.rel (0) target = $region13
    $region12: #{tpu_custom_call.1} parent=1 // pred_region
      _
    $region13: #{tpu_custom_call.1} parent=1 // pred_fallthru
      _
    %v15 = vld [vmem:[%s0] sm:$0xf]
    %v16 = vmul.f32 %v15, 0.5
    %v17 = vand.u32 2147483647, %v16
    %vm18 = vcmp.le.f32.partialorder %v17, 0.7853982
    %vm19 = vcmp.lt.s32.totalorder %v16, 0
    %v20 = vand.u32 %v16, 2139095040
    %v21 = vshrl.u32 %v20, 23
    %v22 = vsub.s32 %v21, 127
    %v23 = vand.u32 2147483647, %v16
    %v24 = vand.u32 %v23, 8388607
    %v25 = vor.u32 %v24, 8388608
    %v26 = vsub.s32 0, %v25
    %v27 = vadd.s32 %v22, 1
    %vm28 = vcmp.gt.s32.totalorder %v27, 0
    %v29 = vsel %vm28, %v27, 0
    %v30 = vshrl.u32 %v29, 5
    %v31 = vand.u32 %v29, 31
    %v32 = vsub.s32 32, %v31
    %v33 = vshrl.u32 683565275, %v32
    %v34 = vshll.u32 683565275, %v31
    %v35 = vshrl.u32 2475754826, %v32
    %v36 = vor.u32 %v34, %v35
    %v37 = vshll.u32 2475754826, %v31
    %v38 = vshrl.u32 2131351028, %v32
    %v39 = vor.u32 %v37, %v38
    %v40 = vshll.u32 2131351028, %v31
    %v41 = vshrl.u32 2102212464, %v32
    %v42 = vor.u32 %v40, %v41
    %v43 = vshll.u32 2102212464, %v31
    %v44 = vshrl.u32 920167782, %v32
    %v45 = vor.u32 %v43, %v44
    %v46 = vshll.u32 920167782, %v31
    %v47 = vshrl.u32 1326507024, %v32
    %v48 = vor.u32 %v46, %v47
    %vm49 = vcmp.lt.s32.totalorder %v30, 1
    %vm50 = vcmp.lt.s32.totalorder %v30, 2
    %vm51 = vcmp.lt.s32.totalorder %v30, 3
    %vm52 = vcmp.lt.s32.totalorder %v30, 4
    %v53 = vsel %vm49, %v33, %v36
    %v54 = vsel %vm52, %v42, 2102212464
    %v55 = vsel %vm51, %v39, %v54
    %v56 = vsel %vm50, %v53, %v55
    %v57 = vsel %vm49, %v36, %v39
    %v58 = vsel %vm52, %v45, 920167782
    %v59 = vsel %vm51, %v42, %v58
    %v60 = vsel %vm50, %v57, %v59
    %v61 = vsel %vm49, %v39, %v42
    %v62 = vsel %vm52, %v48, 1326507024
    %v63 = vsel %vm51, %v45, %v62
    %v64 = vsel %vm50, %v61, %v63
    %v65 = vshll.u32 %v25, 8
    %v66 = vmul.u32.u64.compose %v65, %v64
    %v67 = vextract.low.u32 %v66
    %v68 = vextract.high.u32 %v66
    %v69 = vmul.u32.u64.compose %v65, %v60
    %v70 = vextract.low.u32 %v69
    %v71 = vextract.high.u32 %v69
    %v72 = vmul.u32 %v65, %v56
    %v73 = vadd.s32 %v68, %v70
    %vm74 = vc.u32 %v68, %v70
    %v75 = vadd.s32 %v71, 1
    %v76 = vsel %vm74, %v75, %v71
    %v77 = vadd.s32 %v72, %v76
    %v78 = vadd.s32 %v77, 536870912
    %v79 = vshrl.u32 %v78, 30
    %v80 = vshll.u32 %v79, 30
    %v81 = vsub.s32 %v77, %v80
    %vm82 = vcmp.lt.s32.totalorder %v81, 0
    %v83 = vsub.s32 0, %v81
    %v84 = vsel %vm82, %v83, %v81
    %v85 = vclz %v84
    %v86 = vsub.s32 %v85, 2
    %vm87 = vcmp.gt.s32.totalorder 0, %v86
    %v88 = vsel %vm87, 0, %v86
    %v89 = vsub.s32 32, %v88
    %v90 = vshll.u32 %v81, %v88
    %v91 = vshrl.u32 %v73, %v89
    %v92 = vor.u32 %v90, %v91
    %v93 = vsub.s32 4294967266, %v88
    %v94 = vadd.s32 %v93, 127
    %v95 = vshll.u32 %v94, 23
    %v96 = vor.u32 4788187, %v95
    %v97 = vand.u32 2147483647, %v96
    %v99 = vcvt.s32.f32 %v92
    %v100 = vmul.f32 %v99, %v97
    %v101 = vxor.u32 %v100, 2147483648
    %v102 = vsel %vm19, %v101, %v100
    %v103 = vsub.s32 4, %v79
    %v104 = vsel %vm19, %v103, %v79
    %v105 = vsel %vm18, %v16, %v102
    %v106 = vsel %vm18, 0, %v104
    %v107 = vcosq.f32.pop %v105
    %v108 = vsinq.f32.pop %v105
    %vm109 = vweird.f32 %v16
    %v110 = vand.u32 %v106, 3
    %vm111 = vcmp.lt.s32.totalorder %v110, 2
    %vm112 = vcmp.eq.s32.totalorder %v110, 0
    %v113 = vxor.u32 %v108, 2147483648
    %v114 = vsel %vm112, %v107, %v113
    %vm115 = vcmp.eq.s32.totalorder %v110, 2
    %v116 = vxor.u32 %v107, 2147483648
    %v117 = vsel %vm115, %v116, %v108
    %v118 = vsel %vm111, %v114, %v117
    %v119 = vsel %vm109, nan, %v118
    %v120 = vand.u32 2147483647, %v16
    %vm121 = vcmp.le.f32.partialorder %v120, 0.7853982
    %vm122 = vcmp.lt.s32.totalorder %v16, 0
    %v123 = vand.u32 %v16, 2139095040
    %v124 = vshrl.u32 %v123, 23
    %v125 = vsub.s32 %v124, 127
    %v126 = vand.u32 2147483647, %v16
    %v127 = vand.u32 %v126, 8388607
    %v128 = vor.u32 %v127, 8388608
    %v129 = vsub.s32 0, %v128
    %v130 = vadd.s32 %v125, 1
    %vm131 = vcmp.gt.s32.totalorder %v130, 0
    %v132 = vsel %vm131, %v130, 0
    %v133 = vshrl.u32 %v132, 5
    %v134 = vand.u32 %v132, 31
    %v135 = vsub.s32 32, %v134
    %v136 = vshrl.u32 683565275, %v135
    %v137 = vshll.u32 683565275, %v134
    %v138 = vshrl.u32 2475754826, %v135
    %v139 = vor.u32 %v137, %v138
    %v140 = vshll.u32 2475754826, %v134
    %v141 = vshrl.u32 2131351028, %v135
    %v142 = vor.u32 %v140, %v141
    %v143 = vshll.u32 2131351028, %v134
    %v144 = vshrl.u32 2102212464, %v135
    %v145 = vor.u32 %v143, %v144
    %v146 = vshll.u32 2102212464, %v134
    %v147 = vshrl.u32 920167782, %v135
    %v148 = vor.u32 %v146, %v147
    %v149 = vshll.u32 920167782, %v134
    %v150 = vshrl.u32 1326507024, %v135
    %v151 = vor.u32 %v149, %v150
    %vm152 = vcmp.lt.s32.totalorder %v133, 1
    %vm153 = vcmp.lt.s32.totalorder %v133, 2
    %vm154 = vcmp.lt.s32.totalorder %v133, 3
    %vm155 = vcmp.lt.s32.totalorder %v133, 4
    %v156 = vsel %vm152, %v136, %v139
    %v157 = vsel %vm155, %v145, 2102212464
    %v158 = vsel %vm154, %v142, %v157
    %v159 = vsel %vm153, %v156, %v158
    %v160 = vsel %vm152, %v139, %v142
    %v161 = vsel %vm155, %v148, 920167782
    %v162 = vsel %vm154, %v145, %v161
    %v163 = vsel %vm153, %v160, %v162
    %v164 = vsel %vm152, %v142, %v145
    %v165 = vsel %vm155, %v151, 1326507024
    %v166 = vsel %vm154, %v148, %v165
    %v167 = vsel %vm153, %v164, %v166
    %v168 = vshll.u32 %v128, 8
    %v169 = vmul.u32.u64.compose %v168, %v167
    %v170 = vextract.low.u32 %v169
    %v171 = vextract.high.u32 %v169
    %v172 = vmul.u32.u64.compose %v168, %v163
    %v173 = vextract.low.u32 %v172
    %v174 = vextract.high.u32 %v172
    %v175 = vmul.u32 %v168, %v159
    %v176 = vadd.s32 %v171, %v173
    %vm177 = vc.u32 %v171, %v173
    %v178 = vadd.s32 %v174, 1
    %v179 = vsel %vm177, %v178, %v174
    %v180 = vadd.s32 %v175, %v179
    %v181 = vadd.s32 %v180, 536870912
    %v182 = vshrl.u32 %v181, 30
    %v183 = vshll.u32 %v182, 30
    %v184 = vsub.s32 %v180, %v183
    %vm185 = vcmp.lt.s32.totalorder %v184, 0
    %v186 = vsub.s32 0, %v184
    %v187 = vsel %vm185, %v186, %v184
    %v188 = vclz %v187
    %v189 = vsub.s32 %v188, 2
    %vm190 = vcmp.gt.s32.totalorder 0, %v189
    %v191 = vsel %vm190, 0, %v189
    %v192 = vsub.s32 32, %v191
    %v193 = vshll.u32 %v184, %v191
    %v194 = vshrl.u32 %v176, %v192
    %v195 = vor.u32 %v193, %v194
    %v196 = vsub.s32 4294967266, %v191
    %v197 = vadd.s32 %v196, 127
    %v198 = vshll.u32 %v197, 23
    %v199 = vor.u32 4788187, %v198
    %v200 = vand.u32 2147483647, %v199
    %v202 = vcvt.s32.f32 %v195
    %v203 = vmul.f32 %v202, %v200
    %v204 = vxor.u32 %v203, 2147483648
    %v205 = vsel %vm122, %v204, %v203
    %v206 = vsub.s32 4, %v182
    %v207 = vsel %vm122, %v206, %v182
    %v208 = vsel %vm121, %v16, %v205
    %v209 = vsel %vm121, 0, %v207
    %v210 = vcosq.f32.pop %v208
    %v211 = vsinq.f32.pop %v208
    %vm212 = vweird.f32 %v16
    %v213 = vadd.s32 %v209, 3
    %v214 = vand.u32 %v213, 3
    %vm215 = vcmp.lt.s32.totalorder %v214, 2
    %vm216 = vcmp.eq.s32.totalorder %v214, 0
    %v217 = vxor.u32 %v211, 2147483648
    %v218 = vsel %vm216, %v210, %v217
    %vm219 = vcmp.eq.s32.totalorder %v214, 2
    %v220 = vxor.u32 %v210, 2147483648
    %v221 = vsel %vm219, %v220, %v211
    %v222 = vsel %vm215, %v218, %v221
    %v223 = vsel %vm212, nan, %v222
    %v224 = vlaneseq
    %v225 = vshrl.u32 %v224, 7
    %v226 = vadd.s32 %v225, 8
    %v227 = vand.u32 %v225, 8
    %v228 = vand.u32 %v226, 8
    %vm229 = vcmp.gt.s32.totalorder %v227, 0
    %vm230 = vcmp.gt.s32.totalorder %v228, 0
    %v231 = vsel %vm229, 1, 0
    %v232 = vsel %vm230, 1, 0
    %vm233 = vcmp.eq.s32.totalorder %v231, 1
    %vm234 = vcmp.eq.s32.totalorder %v232, 1
    %v235 = vlaneseq
    %v236 = vshrl.u32 %v235, 7
    %v237 = vsub.s32 0, %v236
    %v238 = vrot.slane %v223, %v237
    %v239 = vlaneseq
    %v240 = vshrl.u32 %v239, 7
    %v241 = vsub.s32 0, %v240
    %v242 = vrot.slane %v119, %v241
    %v243 = vsel %vm233, %v238, %v242
    %v244 = vsel %vm234, %v238, %v242
    %v245 = vand.u32 %v225, 4
    %v246 = vand.u32 %v226, 4
    %vm247 = vcmp.gt.s32.totalorder %v245, 0
    %vm248 = vcmp.gt.s32.totalorder %v246, 0
    %v249 = vsel %vm247, 1, 0
    %v250 = vsel %vm248, 1, 0
    %vm251 = vcmp.eq.s32.totalorder %v249, 1
    %vm252 = vcmp.eq.s32.totalorder %v250, 1
    %v253 = vlaneseq
    %v254 = vshrl.u32 %v253, 7
    %v255 = vsub.s32 1, %v254
    %v256 = vrot.slane %v223, %v255
    %v257 = vlaneseq
    %v258 = vshrl.u32 %v257, 7
    %v259 = vsub.s32 1, %v258
    %v260 = vrot.slane %v119, %v259
    %v261 = vsel %vm251, %v256, %v260
    %v262 = vsel %vm252, %v256, %v260
    %v263 = vmul.f32 %v243, %v261
    %v264 = vmul.f32 %v244, %v262
    %v265 = vand.u32 %v225, 2
    %v266 = vand.u32 %v226, 2
    %vm267 = vcmp.gt.s32.totalorder %v265, 0
    %vm268 = vcmp.gt.s32.totalorder %v266, 0
    %v269 = vsel %vm267, 1, 0
    %v270 = vsel %vm268, 1, 0
    %vm271 = vcmp.eq.s32.totalorder %v269, 1
    %vm272 = vcmp.eq.s32.totalorder %v270, 1
    %v273 = vlaneseq
    %v274 = vshrl.u32 %v273, 7
    %v275 = vsub.s32 2, %v274
    %v276 = vrot.slane %v223, %v275
    %v277 = vlaneseq
    %v278 = vshrl.u32 %v277, 7
    %v279 = vsub.s32 2, %v278
    %v280 = vrot.slane %v119, %v279
    %v281 = vsel %vm271, %v276, %v280
    %v282 = vsel %vm272, %v276, %v280
    %v283 = vmul.f32 %v263, %v281
    %v284 = vmul.f32 %v264, %v282
    %v285 = vand.u32 %v225, 1
    %v286 = vand.u32 %v226, 1
    %vm287 = vcmp.gt.s32.totalorder %v285, 0
    %vm288 = vcmp.gt.s32.totalorder %v286, 0
    %v289 = vsel %vm287, 1, 0
    %v290 = vsel %vm288, 1, 0
    %vm291 = vcmp.eq.s32.totalorder %v289, 1
    %vm292 = vcmp.eq.s32.totalorder %v290, 1
    %v293 = vlaneseq
    %v294 = vshrl.u32 %v293, 7
    %v295 = vsub.s32 3, %v294
    %v296 = vrot.slane %v223, %v295
    %v297 = vlaneseq
    %v298 = vshrl.u32 %v297, 7
    %v299 = vsub.s32 3, %v298
    %v300 = vrot.slane %v119, %v299
    %v301 = vsel %vm291, %v296, %v300
    %v302 = vsel %vm292, %v296, %v300
    %v303 = vmul.f32 %v283, %v301
    %v304 = vmul.f32 %v284, %v302
    %v305 = vld [vmem:[%s1] sm:$0xff]
    %v306 = vld [vmem:[%s1 + $0x8] sm:$0xff]
    %v307 = vld [vmem:[%s1 + $0x10] sm:$0xff]
    %v308 = vld [vmem:[%s1 + $0x18] sm:$0xff]
    %vm309 = vcmask 130048
    %v311 = vsel %vm309, %v305, 0
    %v314 = vsel %vm309, %v306, 0
    %v317 = vsel %vm309, %v307, 0
    %v320 = vsel %vm309, %v308, 0
    %322 = vmatprep.subr.mxu0 0.0
    %323 = vmatpush1.msra.mxu0 %v303
    %324 = vmatprep.subr.mxu0 0.0
    %325 = vmatpush1.msra.mxu0 %v304
    %326 = vmatprep.subr.mxu0 0.0
    %327 = vmatpush1.msra.mxu0 0.0
    %328 = vmatprep.subr.mxu0 0.0
    %329 = vmatpush1.msra.mxu0 0.0
    %330 = vmatprep.subr.mxu0 0.0
    %331 = vmatpush1.msra.mxu0 0.0
    %332 = vmatprep.subr.mxu0 0.0
    %333 = vmatpush1.msra.mxu0 0.0
    %334 = vmatprep.subr.mxu0 0.0
    %335 = vmatpush1.msra.mxu0 0.0
    %336 = vmatprep.subr.mxu0 0.0
    %337 = vmatpush1.msra.mxu0 0.0
    %338 = vmatprep.subr.mxu0 0.0
    %339 = vmatpush1.msra.mxu0 0.0
    %340 = vmatprep.subr.mxu0 0.0
    %341 = vmatpush1.msra.mxu0 0.0
    %342 = vmatprep.subr.mxu0 0.0
    %343 = vmatpush1.msra.mxu0 0.0
    %344 = vmatprep.subr.mxu0 0.0
    %345 = vmatpush1.msra.mxu0 0.0
    %346 = vmatprep.subr.mxu0 0.0
    %347 = vmatpush1.msra.mxu0 0.0
    %348 = vmatprep.subr.mxu0 0.0
    %349 = vmatpush1.msra.mxu0 0.0
    %350 = vmatprep.subr.mxu0 0.0
    %351 = vmatpush1.msra.mxu0 0.0
    %352 = vmatprep.subr.mxu0 0.0
    %353 = vmatpush1.msra.mxu0 0.0
    %354 = vmatprep.subr.mxu0 0.0
    %355 = vmatpush1.msra.mxu0 0.0
    %356 = vmatprep.subr.mxu0 0.0
    %357 = vmatpush1.msra.mxu0 0.0
    %358 = vmatprep.subr.mxu0 0.0
    %359 = vmatpush1.msra.mxu0 0.0
    %360 = vmatprep.subr.mxu0 0.0
    %361 = vmatpush1.msra.mxu0 0.0
    %362 = vmatprep.subr.mxu0 0.0
    %363 = vmatpush1.msra.mxu0 0.0
    %364 = vmatprep.subr.mxu0 0.0
    %365 = vmatpush1.msra.mxu0 0.0
    %366 = vmatprep.subr.mxu0 0.0
    %367 = vmatpush1.msra.mxu0 0.0
    %368 = vmatprep.subr.mxu0 0.0
    %369 = vmatpush1.msra.mxu0 0.0
    %370 = vmatprep.subr.mxu0 0.0
    %371 = vmatpush1.msra.mxu0 0.0
    %372 = vmatprep.subr.mxu0 0.0
    %373 = vmatpush1.msra.mxu0 0.0
    %374 = vmatprep.subr.mxu0 0.0
    %375 = vmatpush1.msra.mxu0 0.0
    %376 = vmatprep.subr.mxu0 0.0
    %377 = vmatpush1.msra.mxu0 0.0
    %378 = vmatprep.subr.mxu0 0.0
    %379 = vmatpush1.msra.mxu0 0.0
    %380 = vmatprep.subr.mxu0 0.0
    %381 = vmatpush1.msra.mxu0 0.0
    %382 = vmatprep.subr.mxu0 0.0
    %383 = vmatpush1.msra.mxu0 0.0
    %384 = vmatprep.subr.mxu0 0.0
    %385 = vmatpush1.msra.mxu0 0.0
    %386 = vmatprep.mubr.f32.mxu0 0.0
    %387 = vmatmul.mubr.f32.gmra.mrb[0].mxu0 %v311
    %v388 = vpop.f32.mrb[0].mxu0
    %v389 = vadd.f32 0.0, %v388
    %v390 = vpop.f32.mrb[0].mxu0
    %391 = vmatprep.mubr.f32.mxu0 0.0
    %392 = vmatmul.mubr.f32.gmra.mrb[0].mxu0 %v314
    %v393 = vpop.f32.mrb[0].mxu0
    %v394 = vadd.f32 0.0, %v393
    %v395 = vpop.f32.mrb[0].mxu0
    %396 = vmatprep.mubr.f32.mxu0 0.0
    %397 = vmatmul.mubr.f32.gmra.mrb[0].mxu0 %v317
    %v398 = vpop.f32.mrb[0].mxu0
    %v399 = vadd.f32 0.0, %v398
    %v400 = vpop.f32.mrb[0].mxu0
    %401 = vmatprep.mubr.f32.mxu0 0.0
    %402 = vmatmul.mubr.f32.gmra.mrb[0].mxu0 %v320
    %v403 = vpop.f32.mrb[0].mxu0
    %v404 = vadd.f32 0.0, %v403
    %v405 = vpop.f32.mrb[0].mxu0
    %406 = vdwg.mxu0
    %v407 = vld [vmem:[%s2] sm:$0xf]
    %v408 = vmul.f32 %v389, %v389
    %v409 = vmul.f32 %v394, %v394
    %v410 = vmul.f32 %v399, %v399
    %v411 = vmul.f32 %v404, %v404
    %vm412 = vcmask 261120
    %v414 = vsel %vm412, %v407, 0
    %416 = vmatprep.subr.mxu0 0.0
    %417 = vmatpush1.msra.mxu0 %v408
    %418 = vmatprep.subr.mxu0 0.0
    %419 = vmatpush1.msra.mxu0 %v409
    %420 = vmatprep.subr.mxu0 0.0
    %421 = vmatpush1.msra.mxu0 %v410
    %422 = vmatprep.subr.mxu0 0.0
    %423 = vmatpush1.msra.mxu0 %v411
    %424 = vmatprep.subr.mxu0 0.0
    %425 = vmatpush1.msra.mxu0 0.0
    %426 = vmatprep.subr.mxu0 0.0
    %427 = vmatpush1.msra.mxu0 0.0
    %428 = vmatprep.subr.mxu0 0.0
    %429 = vmatpush1.msra.mxu0 0.0
    %430 = vmatprep.subr.mxu0 0.0
    %431 = vmatpush1.msra.mxu0 0.0
    %432 = vmatprep.subr.mxu0 0.0
    %433 = vmatpush1.msra.mxu0 0.0
    %434 = vmatprep.subr.mxu0 0.0
    %435 = vmatpush1.msra.mxu0 0.0
    %436 = vmatprep.subr.mxu0 0.0
    %437 = vmatpush1.msra.mxu0 0.0
    %438 = vmatprep.subr.mxu0 0.0
    %439 = vmatpush1.msra.mxu0 0.0
    %440 = vmatprep.subr.mxu0 0.0
    %441 = vmatpush1.msra.mxu0 0.0
    %442 = vmatprep.subr.mxu0 0.0
    %443 = vmatpush1.msra.mxu0 0.0
    %444 = vmatprep.subr.mxu0 0.0
    %445 = vmatpush1.msra.mxu0 0.0
    %446 = vmatprep.subr.mxu0 0.0
    %447 = vmatpush1.msra.mxu0 0.0
    %448 = vmatprep.subr.mxu0 0.0
    %449 = vmatpush1.msra.mxu0 0.0
    %450 = vmatprep.subr.mxu0 0.0
    %451 = vmatpush1.msra.mxu0 0.0
    %452 = vmatprep.subr.mxu0 0.0
    %453 = vmatpush1.msra.mxu0 0.0
    %454 = vmatprep.subr.mxu0 0.0
    %455 = vmatpush1.msra.mxu0 0.0
    %456 = vmatprep.subr.mxu0 0.0
    %457 = vmatpush1.msra.mxu0 0.0
    %458 = vmatprep.subr.mxu0 0.0
    %459 = vmatpush1.msra.mxu0 0.0
    %460 = vmatprep.subr.mxu0 0.0
    %461 = vmatpush1.msra.mxu0 0.0
    %462 = vmatprep.subr.mxu0 0.0
    %463 = vmatpush1.msra.mxu0 0.0
    %464 = vmatprep.subr.mxu0 0.0
    %465 = vmatpush1.msra.mxu0 0.0
    %466 = vmatprep.subr.mxu0 0.0
    %467 = vmatpush1.msra.mxu0 0.0
    %468 = vmatprep.subr.mxu0 0.0
    %469 = vmatpush1.msra.mxu0 0.0
    %470 = vmatprep.subr.mxu0 0.0
    %471 = vmatpush1.msra.mxu0 0.0
    %472 = vmatprep.subr.mxu0 0.0
    %473 = vmatpush1.msra.mxu0 0.0
    %474 = vmatprep.subr.mxu0 0.0
    %475 = vmatpush1.msra.mxu0 0.0
    %476 = vmatprep.subr.mxu0 0.0
    %477 = vmatpush1.msra.mxu0 0.0
    %478 = vmatprep.subr.mxu0 0.0
    %479 = vmatpush1.msra.mxu0 0.0
    %480 = vmatprep.mubr.f32.mxu0 0.0
    %481 = vmatmul.mubr.f32.gmra.mrb[0].mxu0 %v414
    %v482 = vpop.f32.mrb[0].mxu0
    %v483 = vadd.f32 0.0, %v482
    %v484 = vpop.f32.mrb[0].mxu0
    %485 = vdwg.mxu0
    %486 = vst [vmem:[#allocation2] sm:$0xf] %v483
    // Predicated region
    $region14: #{tpu_custom_call.1} parent=1 // pred_check
      _
    $region15: #{tpu_custom_call.1} parent=1 // pred_check_branch
      %488 = sbr.rel (0) target = $region17
    $region16: #{tpu_custom_call.1} parent=1 // pred_region
      %s490 = ssub.s32 64, 64
      %491 = vsyncadd [#allocation3], %s490
      %s493 = sshll.u32 [#allocation2], 4
      %s494 = int_to_ptr.vmem [resolvable:$true] %s493
      %496 = dma.vmem_to_hbm [thread:$0]  %s494, 64, %s3, [#allocation3]
    $region17: #{tpu_custom_call.1} parent=1 // pred_fallthru
      _
    // Predicated region
    $region18: #{tpu_custom_call.1} parent=1 // pred_check
      _
    $region19: #{tpu_custom_call.1} parent=1 // pred_check_branch
      %498 = sbr.rel (0) target = $region21
    $region20: #{tpu_custom_call.1} parent=1 // pred_region
      %499 = dma.done [#allocation3], 64
    $region21: #{tpu_custom_call.1} parent=1 // pred_fallthru
      _
    %500 = vsyncpa [#allocation3], 1

</llo_original>
